<compile_context>
chip_gen: v7x
topology: tpu7x:2x2x1
jax: 0.10.0
libtpu: 0.0.40
codegen_flags: <defaults>
</compile_context>

<pallas_src>
import functools
import math

import jax
import jax.numpy as jnp
from jax.experimental import pallas as pl
from jax.experimental.pallas import tpu as pltpu


def _pos_enc_kernel(x_ref, pe_ref, o_ref, *, batch: int, d_model: int):
    # x_ref / o_ref : (TS, B * D) in VMEM (lane-dense, contiguous rows)
    # pe_ref        : (TS, D)     in VMEM (middle size-1 dim squeezed)
    pe = pe_ref[...].astype(x_ref.dtype)          # no-op cast if dtypes match
    for b in range(batch):                        # static unroll; pe reused from vregs
        sl = pl.ds(b * d_model, d_model)          # aligned lane slice (static start)
        o_ref[:, sl] = x_ref[:, sl] + pe


def make_positional_encoding(d_model: int, max_len: int = 512,
                             dtype=jnp.float32):
    """Sinusoidal table, identical to the PyTorch __init__.

    Returns pe with shape [max_len, 1, d_model] (the torch buffer layout),
    built once at init time in the target dtype."""
    position = jnp.arange(max_len, dtype=jnp.float32)[:, None]            # (L, 1)
    div_term = jnp.exp(jnp.arange(0, d_model, 2, dtype=jnp.float32)
                       * (-math.log(10000.0) / d_model))                  # (D/2,)
    angles = position * div_term                                          # (L, D/2)
    pe = jnp.stack([jnp.sin(angles), jnp.cos(angles)], axis=-1)           # sin even / cos odd
    pe = pe.reshape(max_len, d_model)
    return pe.astype(dtype)[:, None, :]                                   # (L, 1, D)


def positional_encoding_forward(x, pe, *, vmem_budget_bytes: int = 24 << 20):
    """x: [seq, batch, d_model]; pe: [max_len, 1, d_model] (constant buffer).

    Returns x + pe[:seq] broadcast over batch, shape [seq, batch, d_model]."""
    S, B, D = x.shape
    L = pe.shape[0]
    assert pe.shape[1:] == (1, D) and L >= S

    x_isz = jnp.dtype(x.dtype).itemsize
    pe_isz = jnp.dtype(pe.dtype).itemsize

    # --- seq tile from a VMEM budget: double-buffered x & out blocks + pe block ---
    per_row_bytes = 2 * 2 * B * D * x_isz + 2 * D * pe_isz
    if S >= 8:
        ts = max(8, vmem_budget_bytes // per_row_bytes)
        ts = min(ts, max(8, pl.cdiv(S, 2)))   # >= 2 grid steps when possible (v7x dual-TC)
        ts = min(ts, S)
        ts -= ts % 8                          # sublane-dense blocks
    else:
        ts = S                                # tiny seq: block == full dim
    n_tiles = pl.cdiv(S, ts)                  # ragged last block: padded reads, masked writes

    # Free bitcast-reshape of contiguous dims: lane axis = full B*D row.
    x2 = x.reshape(S, B * D)

    cost = pl.CostEstimate(
        flops=S * B * D,
        transcendentals=0,
        bytes_accessed=2 * S * B * D * x_isz + S * D * pe_isz,
    )

    out2 = pl.pallas_call(
        functools.partial(_pos_enc_kernel, batch=B, d_model=D),
        out_shape=jax.ShapeDtypeStruct((S, B * D), x.dtype),
        grid_spec=pltpu.PrefetchScalarGridSpec(
            num_scalar_prefetch=0,
            grid=(n_tiles,),
            in_specs=[
                pl.BlockSpec((ts, B * D), lambda i: (i, 0)),
                pl.BlockSpec((ts, None, D), lambda i: (i, 0, 0)),   # size-1 dim squeezed
            ],
            out_specs=pl.BlockSpec((ts, B * D), lambda i: (i, 0)),
        ),
        compiler_params=pltpu.CompilerParams(
            dimension_semantics=("parallel",),
            vmem_limit_bytes=48 << 20,        # raise v5e/v6e scoped default; < v7x 64 MiB
        ),
        cost_estimate=cost,
    )(x2, pe)

    return out2.reshape(S, B, D)


if __name__ == "__main__":
    key = jax.random.PRNGKey(0)
    k1, k2 = jax.random.split(key)

    fwd = jax.jit(positional_encoding_forward)

    # Test 1: seq-first [seq, batch, d_model], batch < 8 (dense-layout path).
    seq, batch, d_model, max_len = 16, 4, 128, 512
    pe = make_positional_encoding(d_model, max_len)           # built once, like __init__
    x = jax.random.normal(k1, (seq, batch, d_model), dtype=jnp.float32)
    y = fwd(x, pe)
    jax.block_until_ready(y)
    y_ref = x + pe[:seq]                                      # (seq,1,D) broadcast, like torch
    assert y.shape == (seq, batch, d_model)
    assert jnp.allclose(y, y_ref, atol=1e-6), "mismatch vs reference (test 1)"

    # Test 2: ragged seq length -> exercises masked last block (no wrapper pad/slice).
    seq2, batch2, d_model2 = 13, 3, 128
    pe2 = make_positional_encoding(d_model2, max_len)
    x2 = jax.random.normal(k2, (seq2, batch2, d_model2), dtype=jnp.float32)
    y2 = fwd(x2, pe2)
    jax.block_until_ready(y2)
    assert jnp.allclose(y2, x2 + pe2[:seq2], atol=1e-6), "mismatch vs reference (test 2)"

    print("KERNEL_OK")
</pallas_src>

<mosaic_0001>
module attributes {stable_mosaic.version = 11 : i64} {
  func.func @_pos_enc_kernel(%arg0: i32, %arg1: memref<8x512xf32, #tpu.memory_space<vmem>>, %arg2: memref<8x1x128xf32, #tpu.memory_space<vmem>>, %arg3: memref<8x512xf32, #tpu.memory_space<vmem>>) attributes {dimension_semantics = [#tpu.dimension_semantics<parallel>], iteration_bounds = array<i64: 2>, scalar_prefetch = 0 : i64, scratch_operands = 0 : i64, tpu.core_type = #tpu.core_type<tc>, window_params = [{transform_indices = @transform_0, window_bounds = array<i64: 8, 512>}, {transform_indices = @transform_1, window_bounds = array<i64: 8, 1, 128>}, {transform_indices = @transform_2, window_bounds = array<i64: 8, 512>}]} {
    %c0 = arith.constant 0 : index
    %c0_0 = arith.constant 0 : index
    %c0_1 = arith.constant 0 : index
    %0 = vector.load %arg2[%c0, %c0_0, %c0_1] : memref<8x1x128xf32, #tpu.memory_space<vmem>>, vector<8x1x128xf32>
    %1 = vector.shape_cast %0 : vector<8x1x128xf32> to vector<8x128xf32>
    %c0_2 = arith.constant 0 : index
    %c0_3 = arith.constant 0 : index
    %2 = vector.load %arg1[%c0_2, %c0_3] : memref<8x512xf32, #tpu.memory_space<vmem>>, vector<8x128xf32>
    %3 = arith.addf %2, %1 : vector<8x128xf32>
    %c0_4 = arith.constant 0 : index
    %c0_5 = arith.constant 0 : index
    %4 = vector.load %arg3[%c0_4, %c0_5] : memref<8x512xf32, #tpu.memory_space<vmem>>, vector<8x128xf32>
    tpu.vector_store %arg3[%c0_4, %c0_5], %3 {strides = array<i32>} : memref<8x512xf32, #tpu.memory_space<vmem>>, vector<8x128xf32>,
    %c0_6 = arith.constant 0 : index
    %c128 = arith.constant 128 : index
    %5 = vector.load %arg1[%c0_6, %c128] : memref<8x512xf32, #tpu.memory_space<vmem>>, vector<8x128xf32>
    %6 = arith.addf %5, %1 : vector<8x128xf32>
    %c0_7 = arith.constant 0 : index
    %c128_8 = arith.constant 128 : index
    %7 = vector.load %arg3[%c0_7, %c128_8] : memref<8x512xf32, #tpu.memory_space<vmem>>, vector<8x128xf32>
    tpu.vector_store %arg3[%c0_7, %c128_8], %6 {strides = array<i32>} : memref<8x512xf32, #tpu.memory_space<vmem>>, vector<8x128xf32>,
    %c0_9 = arith.constant 0 : index
    %c256 = arith.constant 256 : index
    %8 = vector.load %arg1[%c0_9, %c256] : memref<8x512xf32, #tpu.memory_space<vmem>>, vector<8x128xf32>
    %9 = arith.addf %8, %1 : vector<8x128xf32>
    %c0_10 = arith.constant 0 : index
    %c256_11 = arith.constant 256 : index
    %10 = vector.load %arg3[%c0_10, %c256_11] : memref<8x512xf32, #tpu.memory_space<vmem>>, vector<8x128xf32>
    tpu.vector_store %arg3[%c0_10, %c256_11], %9 {strides = array<i32>} : memref<8x512xf32, #tpu.memory_space<vmem>>, vector<8x128xf32>,
    %c0_12 = arith.constant 0 : index
    %c384 = arith.constant 384 : index
    %11 = vector.load %arg1[%c0_12, %c384] : memref<8x512xf32, #tpu.memory_space<vmem>>, vector<8x128xf32>
    %12 = arith.addf %11, %1 : vector<8x128xf32>
    %c0_13 = arith.constant 0 : index
    %c384_14 = arith.constant 384 : index
    %13 = vector.load %arg3[%c0_13, %c384_14] : memref<8x512xf32, #tpu.memory_space<vmem>>, vector<8x128xf32>
    tpu.vector_store %arg3[%c0_13, %c384_14], %12 {strides = array<i32>} : memref<8x512xf32, #tpu.memory_space<vmem>>, vector<8x128xf32>,
    return
  }
  func.func @transform_0(%arg0: i32) -> (i32, i32) {
    %c0_i32 = arith.constant 0 : i32
    %c0_i32_0 = arith.constant 0 : i32
    return %arg0, %c0_i32 : i32, i32
  }
  func.func @transform_1(%arg0: i32) -> (i32, i32, i32) {
    %c0_i32 = arith.constant 0 : i32
    %c0_i32_0 = arith.constant 0 : i32
    %c0_i32_1 = arith.constant 0 : i32
    return %arg0, %c0_i32, %c0_i32_0 : i32, i32, i32
  }
  func.func @transform_2(%arg0: i32) -> (i32, i32) {
    %c0_i32 = arith.constant 0 : i32
    %c0_i32_0 = arith.constant 0 : i32
    return %arg0, %c0_i32 : i32, i32
  }
}

</mosaic_0001>

<llo_original>
// kernel: positional_encoding_forward.1
$region0: #{positional_encoding_forward.1}
  #allocation0 [shape = 'u32[]', space=smem, size = 0x4, offset = 0x4, fixed_abs, tag = 'smem constant byte address 0x4 - core index']
  #allocation1 [shape = 'u32[144,128]{1,0:T(1,128)}', space=vmem, size = 0x12000, scoped, tag = 'internal scratch']
  %s0 = inlined_call_operand.vmem [shape: f32[16,512], index: 0, kind: input, shape index: {}]
  %s1 = inlined_call_operand.hbm [shape: f32[512,1,128], index: 1, kind: input, shape index: {}]
  %s2 = inlined_call_operand.vmem [shape: f32[16,512], index: 2, kind: output, shape index: {}]
  %s3 = sld [smem:[#allocation0]]
  $region45: #{positional_encoding_forward.1} parent=0
    _
  %s5 = ssub.s32 1, %s3
  %s6 = scalar_select 0, %s5, %s3
  $region1: #{positional_encoding_forward.1} parent=0
    #allocation2 [shape = 'u8[8192]{0}', space=vmem, size = 0x2000, scoped, tag = 'input window, operand 1']
    #allocation3 [shape = 's32[2]{0}', space=sflag, size = 0x8, scoped, tag = 'scoped memory for positional_encoding_forward.1']
    %7 = vsyncpa [#allocation3], 0
    %s8 = scalar_lea.sflag [#allocation3], 1
    %9 = vsyncpa %s8, 0
    loop: start=0, step=1, limit=4
    $region2: #{positional_encoding_forward.1} parent=1 // loop_pre_header
      _
    $region3: #{positional_encoding_forward.1} parent=1 // loop_header
      %s11 = sphi 0, %s15
      %p12 = scmp.ge.s32.totalorder %s11, 4
      %s21 = sphi 0, %s23
      %s24 = sphi 0, %s21
      %s25 = sphi 0, %s24
      %s41 = sphi 0, %s25
      %s47 = sphi 0, %s49
      %s50 = sphi 0, %s47
      %s51 = sphi 0, %s50
      %s67 = sphi 0, %s51
      %s73 = sphi 0, %s75
      %s76 = sphi 0, %s73
      %s77 = sphi 0, %s76
      %s93 = sphi 0, %s77
    $region4: #{positional_encoding_forward.1} parent=1 // loop_header_branch
      %14 = sbr.rel (%p12) target = $region8
    $region5: #{positional_encoding_forward.1} parent=1 // loop_body
      %s16 = ssub.s32 %s11, 1
      %s17 = ssub.s32 %s11, 2
      %s18 = sadd.s32 %s11, 1
      %s19 = ssub.s32 %s11, %s18
      %p20 = scmp.eq.s32.totalorder %s19, 0
      %s22 = sadd.s32 %s21, 1
      %s23 = scalar_select %p20, %s21, %s22
      %p26 = pneg %p20
      %p27 = scmp.eq.s32.totalorder %s11, 1
      %p28 = por %p26, %p27
      %p29 = scmp.ne.s32.totalorder %s21, %s24
      %p30 = scmp.eq.s32.totalorder %s11, 0
      %p31 = por %p29, %p30
      %p32 = scmp.ne.s32.totalorder %s21, %s24
      %p33 = scmp.eq.s32.totalorder %s16, 1
      %p34 = por %p32, %p33
      %p35 = scmp.ne.s32.totalorder %s24, %s25
      %p36 = scmp.eq.s32.totalorder %s16, 0
      %p37 = por %p35, %p36
      %p38 = scmp.ne.s32.totalorder %s24, %s25
      %p39 = scmp.eq.s32.totalorder %s17, 1
      %p40 = por %p38, %p39
      %p42 = scmp.ne.s32.totalorder %s25, %s41
      %p43 = scmp.eq.s32.totalorder %s17, 0
      %p44 = por %p42, %p43
      %s45 = ssub.s32 %s11, %s18
      %p46 = scmp.eq.s32.totalorder %s45, 0
      %s48 = sadd.s32 %s47, 1
      %s49 = scalar_select %p46, %s47, %s48
      %p52 = pneg %p46
      %p53 = scmp.eq.s32.totalorder %s11, 1
      %p54 = por %p52, %p53
      %p55 = scmp.ne.s32.totalorder %s47, %s50
      %p56 = scmp.eq.s32.totalorder %s11, 0
      %p57 = por %p55, %p56
      %p58 = scmp.ne.s32.totalorder %s47, %s50
      %p59 = scmp.eq.s32.totalorder %s16, 1
      %p60 = por %p58, %p59
      %p61 = scmp.ne.s32.totalorder %s50, %s51
      %p62 = scmp.eq.s32.totalorder %s16, 0
      %p63 = por %p61, %p62
      %p64 = scmp.ne.s32.totalorder %s50, %s51
      %p65 = scmp.eq.s32.totalorder %s17, 1
      %p66 = por %p64, %p65
      %p68 = scmp.ne.s32.totalorder %s51, %s67
      %p69 = scmp.eq.s32.totalorder %s17, 0
      %p70 = por %p68, %p69
      %s71 = ssub.s32 %s11, %s18
      %p72 = scmp.eq.s32.totalorder %s71, 0
      %s74 = sadd.s32 %s73, 1
      %s75 = scalar_select %p72, %s73, %s74
      %p78 = pneg %p72
      %p79 = scmp.eq.s32.totalorder %s11, 1
      %p80 = por %p78, %p79
      %p81 = scmp.ne.s32.totalorder %s73, %s76
      %p82 = scmp.eq.s32.totalorder %s11, 0
      %p83 = por %p81, %p82
      %p84 = scmp.ne.s32.totalorder %s73, %s76
      %p85 = scmp.eq.s32.totalorder %s16, 1
      %p86 = por %p84, %p85
      %p87 = scmp.ne.s32.totalorder %s76, %s77
      %p88 = scmp.eq.s32.totalorder %s16, 0
      %p89 = por %p87, %p88
      %p90 = scmp.ne.s32.totalorder %s76, %s77
      %p91 = scmp.eq.s32.totalorder %s17, 1
      %p92 = por %p90, %p91
      %p94 = scmp.ne.s32.totalorder %s77, %s93
      %p95 = scmp.eq.s32.totalorder %s17, 0
      %p96 = por %p94, %p95
      %p97 = scmp.le.s32.totalorder 1, %s11
      %p98 = scmp.lt.s32.totalorder %s11, 3
      %p99 = pnand %p97, %p98
      %p100 = pneg %p99
      // Predicated region
      $region9: #{positional_encoding_forward.1} parent=5 // pred_check
        _
      $region10: #{positional_encoding_forward.1} parent=5 // pred_check_branch
        %102 = sbr.rel (%p99) target = $region12
      $region11: #{positional_encoding_forward.1} parent=5 // pred_region
        %s103 = ssub.s32 %s11, 1
      $region12: #{positional_encoding_forward.1} parent=5 // pred_fallthru
        _
      %p104 = scmp.lt.s32.totalorder %s11, 2
      // Predicated region
      $region13: #{positional_encoding_forward.1} parent=5 // pred_check
        %p105 = pneg %p104
      $region14: #{positional_encoding_forward.1} parent=5 // pred_check_branch
        %107 = sbr.rel (%p105) target = $region16
      $region15: #{positional_encoding_forward.1} parent=5 // pred_region
        // Predicated region
        $region17: #{positional_encoding_forward.1} parent=15 // pred_check
          %p108 = pneg %p31
        $region18: #{positional_encoding_forward.1} parent=15 // pred_check_branch
          %110 = sbr.rel (%p108) target = $region20
        $region19: #{positional_encoding_forward.1} parent=15 // pred_region
          %p111 = scmp.lt.s32.totalorder %s11, 1
          %s112 = scalar_select %p111, %s11, 1
          %s113 = smul.addr %s112, 4
          %s114 = smul.addr %s113, 8
          %s115 = scalar_lea.vmem %s0, %s114
        $region20: #{positional_encoding_forward.1} parent=15 // pred_fallthru
          _
        // Predicated region
        $region21: #{positional_encoding_forward.1} parent=15 // pred_check
          %p116 = pneg %p57
        $region22: #{positional_encoding_forward.1} parent=15 // pred_check_branch
          %118 = sbr.rel (%p116) target = $region24
        $region23: #{positional_encoding_forward.1} parent=15 // pred_region
          %s119 = sand.u32 %s47, 1
          %s120 = scalar_lea.sflag [#allocation3], %s119
          %s121 = sand.u32 %s47, 1
          %s122 = smul.addr %s121, 8
          %s123 = scalar_lea.vmem [#allocation2], %s122
          %s124 = smul.u32 8, %s11
          %s126 = ssub.s32 128, 128
          %127 = vsyncadd %s120, %s126
          %s128 = smul.addr %s124, 16
          %s129 = scalar_lea.hbm %s1, %s128
          %s130 = sshll.u32 %s123, 4
          %s131 = int_to_ptr.vmem [resolvable:$true] %s130
          %136 = dma.hbm_to_vmem [thread:$0]  %s129, 128, %s131, %s120, 16, 16, 1
        $region24: #{positional_encoding_forward.1} parent=15 // pred_fallthru
          _
      $region16: #{positional_encoding_forward.1} parent=5 // pred_fallthru
        _
      %p137 = scmp.le.s32.totalorder 1, %s11
      %p138 = scmp.lt.s32.totalorder %s11, 3
      %p139 = pnand %p137, %p138
      %p140 = pneg %p139
      // Predicated region
      $region25: #{positional_encoding_forward.1} parent=5 // pred_check
        _
      $region26: #{positional_encoding_forward.1} parent=5 // pred_check_branch
        %142 = sbr.rel (%p139) target = $region28
      $region27: #{positional_encoding_forward.1} parent=5 // pred_region
        %s143 = ssub.s32 %s11, 1
        %s144 = sand.u32 %s50, 1
        %s145 = scalar_lea.sflag [#allocation3], %s144
        %s146 = sand.u32 %s50, 1
        %s147 = smul.addr %s146, 8
        %s148 = scalar_lea.vmem [#allocation2], %s147
        // Predicated region
        $region29: #{positional_encoding_forward.1} parent=27 // pred_check
          %p149 = pneg %p63
        $region30: #{positional_encoding_forward.1} parent=27 // pred_check_branch
          %151 = sbr.rel (%p149) target = $region32
        $region31: #{positional_encoding_forward.1} parent=27 // pred_region
          %152 = dma.done %s145, 128
        $region32: #{positional_encoding_forward.1} parent=27 // pred_fallthru
          _
        %p153 = scmp.lt.s32.totalorder %s16, 1
        %s154 = scalar_select %p153, %s16, 1
        %s155 = smul.addr %s154, 4
        %s156 = smul.addr %s155, 8
        %s157 = scalar_lea.vmem %s0, %s156
        %p158 = pneg %p37
        %p159 = pneg %p34
        %s160 = sand.u32 %s50, 1
        %s161 = scalar_lea.sflag [#allocation3], %s160
        %s162 = sand.u32 %s50, 1
        %s163 = smul.addr %s162, 8
        %s164 = scalar_lea.vmem [#allocation2], %s163
        %p165 = pneg %p63
        %p166 = pneg %p60
        %p167 = pneg %p89
        %p168 = pneg %p86
        %p169 = scmp.lt.s32.totalorder %s16, 1
        %s170 = scalar_select %p169, %s16, 1
        %s171 = smul.addr %s170, 4
        %s172 = smul.addr %s171, 8
        %s173 = scalar_lea.vmem %s2, %s172
        %p174 = scmp.lt.s32.totalorder %s16, 1
        %s175 = scalar_select %p174, %s16, 1
        %s176 = smul.addr %s175, 4
        %s177 = smul.addr %s176, 8
        %s178 = scalar_lea.vmem %s0, %s177
        %s179 = smul.u32 8, %s16
        %p180 = scmp.lt.s32.totalorder %s16, 1
        %s181 = scalar_select %p180, %s16, 1
        %s182 = smul.addr %s181, 4
        %s183 = smul.addr %s182, 8
        %s184 = scalar_lea.vmem %s2, %s183
        %v185 = vld [vmem:[%s148] sm:$0x1]
        %v186 = vld [vmem:[%s148 + $0x1] sm:$0x1]
        %v187 = vld [vmem:[%s148 + $0x2] sm:$0x1]
        %v188 = vld [vmem:[%s148 + $0x3] sm:$0x1]
        %v189 = vld [vmem:[%s148 + $0x4] sm:$0x1]
        %v190 = vld [vmem:[%s148 + $0x5] sm:$0x1]
        %v191 = vld [vmem:[%s148 + $0x6] sm:$0x1]
        %v192 = vld [vmem:[%s148 + $0x7] sm:$0x1]
        %v193 = vld [vmem:[%s178] sm:$0xff]
        %v202 = vcombine.low %v185, %v186
        %v203 = vcombine.low %v187, %v188
        %v204 = vcombine.low %v189, %v190
        %v205 = vcombine.low %v191, %v192
        %v207 = vunpack.c.l.s4 1966171168
        %v208 = vunpack.c.0.s8 %v207
        %v209 = vlaneseq
        %v210 = vshrl.u32 %v209, 7
        %v211 = vsub.s32 %v208, %v210
        %v212 = vrot.slane %v202, %v211
        %v214 = vunpack.c.l.s4 1966171168
        %v215 = vunpack.c.0.s8 %v214
        %v216 = vlaneseq
        %v217 = vshrl.u32 %v216, 7
        %v218 = vsub.s32 %v215, %v217
        %v219 = vrot.slane %v203, %v218
        %v221 = vunpack.c.l.s4 1966171168
        %v222 = vunpack.c.0.s8 %v221
        %v223 = vlaneseq
        %v224 = vshrl.u32 %v223, 7
        %v225 = vsub.s32 %v222, %v224
        %v226 = vrot.slane %v204, %v225
        %v228 = vunpack.c.l.s4 1966171168
        %v229 = vunpack.c.0.s8 %v228
        %v230 = vlaneseq
        %v231 = vshrl.u32 %v230, 7
        %v232 = vsub.s32 %v229, %v231
        %v233 = vrot.slane %v205, %v232
        %v234 = vcombine.low %v212, %v219
        %v235 = vcombine.low %v226, %v233
        %v237 = vunpack.c.l.s4 1966171168
        %v238 = vunpack.c.0.s8 %v237
        %v239 = vlaneseq
        %v240 = vshrl.u32 %v239, 7
        %v241 = vsub.s32 %v238, %v240
        %v242 = vrot.slane %v234, %v241
        %v244 = vunpack.c.l.s4 1966171168
        %v245 = vunpack.c.0.s8 %v244
        %v246 = vlaneseq
        %v247 = vshrl.u32 %v246, 7
        %v248 = vsub.s32 %v245, %v247
        %v249 = vrot.slane %v235, %v248
        %v250 = vcombine.low %v242, %v249
        %v252 = vadd.f32 %v193, %v250
        %253 = vst [vmem:[%s184] sm:$0xff] %v252
        %v254 = vld [vmem:[%s178 + $0x8] sm:$0xff]
        %v255 = vadd.f32 %v254, %v250
        %256 = vst [vmem:[%s184 + $0x8] sm:$0xff] %v255
        %v257 = vld [vmem:[%s178 + $0x10] sm:$0xff]
        %v258 = vadd.f32 %v257, %v250
        %259 = vst [vmem:[%s184 + $0x10] sm:$0xff] %v258
        %v260 = vld [vmem:[%s178 + $0x18] sm:$0xff]
        %v261 = vadd.f32 %v260, %v250
        %262 = vst [vmem:[%s184 + $0x18] sm:$0xff] %v261
        %p263 = scmp.lt.s32.totalorder %s16, 1
        %s264 = scalar_select %p263, %s16, 1
        %s265 = smul.addr %s264, 4
        %s266 = smul.addr %s265, 8
        %s267 = scalar_lea.vmem %s2, %s266
        // Predicated region
        $region33: #{positional_encoding_forward.1} parent=27 // pred_check
          %p268 = pneg %p86
        $region34: #{positional_encoding_forward.1} parent=27 // pred_check_branch
          %270 = sbr.rel (%p268) target = $region36
        $region35: #{positional_encoding_forward.1} parent=27 // pred_region
          _
        $region36: #{positional_encoding_forward.1} parent=27 // pred_fallthru
          _
      $region28: #{positional_encoding_forward.1} parent=5 // pred_fallthru
        _
      %p271 = scmp.le.s32.totalorder 2, %s11
      // Predicated region
      $region37: #{positional_encoding_forward.1} parent=5 // pred_check
        %p272 = pneg %p271
      $region38: #{positional_encoding_forward.1} parent=5 // pred_check_branch
        %274 = sbr.rel (%p272) target = $region40
      $region39: #{positional_encoding_forward.1} parent=5 // pred_region
        %s275 = ssub.s32 %s11, 2
        // Predicated region
        $region41: #{positional_encoding_forward.1} parent=39 // pred_check
          %p276 = pneg %p92
        $region42: #{positional_encoding_forward.1} parent=39 // pred_check_branch
          %278 = sbr.rel (%p276) target = $region44
        $region43: #{positional_encoding_forward.1} parent=39 // pred_region
          %p279 = scmp.lt.s32.totalorder %s17, 1
          %s280 = scalar_select %p279, %s17, 1
          %s281 = smul.addr %s280, 4
          %s282 = smul.addr %s281, 8
          %s283 = scalar_lea.vmem %s2, %s282
        $region44: #{positional_encoding_forward.1} parent=39 // pred_fallthru
          _
      $region40: #{positional_encoding_forward.1} parent=5 // pred_fallthru
        _
    $region6: #{positional_encoding_forward.1} parent=1 // loop_footer
      %s15 = sadd.s32 1, %s11
    $region7: #{positional_encoding_forward.1} parent=1 // loop_footer_branch
      %10 = sbr.rel target = $region3
    $region8: #{positional_encoding_forward.1} parent=1 // loop_exit
      _
    %284 = vsyncpa [#allocation3], 1
    %s285 = scalar_lea.sflag [#allocation3], 1
    %286 = vsyncpa %s285, 1

</llo_original>
